<compile_context>
chip_gen: v7x
topology: tpu7x:2x2x1
jax: 0.10.0
libtpu: 0.0.40
codegen_flags: <defaults>
</compile_context>

<pallas_src>
import functools
import re

import numpy as np
import jax
import jax.numpy as jnp
from jax.experimental import pallas as pl
from jax.experimental.pallas import tpu as pltpu

L = 128              # max line length (chars) == lane width of one block
BLOCK_ROWS = 8       # lines per grid step (sublane height of one block)
_BR = "<br />"       # the only multi-character pattern in basic_english
_PAD = 32            # pad char = space (whitespace -> delimiter)

_CLS_CHAR, _CLS_DELIM, _CLS_PUNCT, _CLS_DROP = 0, 1, 2, 3


def _normalize_kernel(x_ref, out_ref):
    x = x_ref[...]                                   # (BLOCK_ROWS, L) int32 ASCII

    # 1) lowercase: 'A'..'Z' -> +32 (integer add instead of a select)
    x = x + ((x >= 65) & (x <= 90)).astype(jnp.int32) * 32

    # 2) "<br />" detection via shifted compares (XLU lane rolls, no MXU):
    #    score[i] = sum_k [x[i + k] == pat[k]]  (roll by L-k == left shift by k)
    score = (x == ord(_BR[0])).astype(jnp.int32)
    for k in range(1, len(_BR)):
        shifted = pltpu.roll(x, shift=L - k, axis=1)
        score = score + (shifted == ord(_BR[k])).astype(jnp.int32)
    # rolls wrap around the lane axis: a full match cannot start in the last
    # len(_BR)-1 lanes, so mask those start positions out.
    lane = jax.lax.broadcasted_iota(jnp.int32, x.shape, 1)
    match = ((score == len(_BR)) & (lane <= L - len(_BR))).astype(jnp.int32)
    # spread each match start over its len(_BR) characters
    spread = match
    for k in range(1, len(_BR)):
        spread = spread + pltpu.roll(match, shift=k, axis=1)
    br_mask = spread > 0

    # 3) per-character classification (classes are mutually exclusive, so an
    #    integer sum of weighted masks replaces the nested selects)
    is_ws = ((x >= 9) & (x <= 13)) | (x == 32)
    is_delim = is_ws | (x == 59) | (x == 58) | br_mask            # ws ; : <br />
    is_drop = x == 34                                             # "
    is_punct = ((x == 39) | (x == 46) | (x == 44) | (x == 40) |
                (x == 41) | (x == 33) | (x == 63))                # ' . , ( ) ! ?
    cls = (is_delim.astype(jnp.int32) * _CLS_DELIM
           + is_drop.astype(jnp.int32) * _CLS_DROP
           + is_punct.astype(jnp.int32) * _CLS_PUNCT)

    # 4) pack lowered char (bits 0..7) and class (bits 8..9): one lane-dense
    #    int32 output -> single unmasked vst and half the writeback DMAs.
    out_ref[...] = x | (cls << 8)


@functools.lru_cache(maxsize=None)
def _make_normalize_call(num_blocks: int):
    rows = num_blocks * BLOCK_ROWS
    return pl.pallas_call(
        _normalize_kernel,
        out_shape=jax.ShapeDtypeStruct((rows, L), jnp.int32),
        grid=(num_blocks,),
        in_specs=[pl.BlockSpec((BLOCK_ROWS, L), lambda i: (i, 0))],
        out_specs=pl.BlockSpec((BLOCK_ROWS, L), lambda i: (i, 0)),
        compiler_params=pltpu.CompilerParams(
            dimension_semantics=("parallel",)),   # v7x: shard blocks over both TCs
    )


def _encode_batch(lines) -> np.ndarray:
    """Encode a batch of lines as (ceil(n/8)*8, 128) int32 ASCII, space-padded."""
    n = len(lines)
    num_blocks = max(1, -(-n // BLOCK_ROWS))
    codes = np.full((num_blocks * BLOCK_ROWS, L), _PAD, dtype=np.int32)
    for i, line in enumerate(lines):
        # TODO(synk): non-ASCII chars map to '?' and lines > 128 chars truncate.
        b = line.encode("ascii", errors="replace")[:L]
        codes[i, : len(b)] = np.frombuffer(b, dtype=np.uint8)
    return codes


def _assemble_tokens(chars_row, cls_row):
    tokens, cur = [], []
    for c, k in zip(chars_row.tolist(), cls_row.tolist()):
        if k == _CLS_DELIM:
            if cur:
                tokens.append("".join(cur))
                cur = []
        elif k == _CLS_PUNCT:
            if cur:
                tokens.append("".join(cur))
                cur = []
            tokens.append(chr(c))
        elif k == _CLS_DROP:
            pass
        else:
            cur.append(chr(c))
    if cur:
        tokens.append("".join(cur))
    return tokens


def basic_english_normalize_batch_pallas(lines):
    """Tokenize a batch of lines with one pallas_call and one device sync."""
    if not lines:
        return []
    codes = _encode_batch(lines)
    num_blocks = codes.shape[0] // BLOCK_ROWS
    packed = _make_normalize_call(num_blocks)(jnp.asarray(codes))
    packed = np.asarray(jax.block_until_ready(packed))[: len(lines)]
    chars = packed & 0xFF
    cls = packed >> 8
    return [_assemble_tokens(chars[i], cls[i]) for i in range(len(lines))]


def basic_english_normalize_pallas(line: str):
    """Pallas-backed equivalent of BasicEnglishNormalize.forward(line)."""
    return basic_english_normalize_batch_pallas([line])[0]


def _ref_basic_english_normalize(line: str):
    # pure-Python reference of torchtext basic_english (lowercase + regex list)
    patterns = [(r"\'", " '  "), (r"\"", ""), (r"\.", " . "), (r"<br \/>", " "),
                (r"\,", " , "), (r"\(", " ( "), (r"\)", " ) "), (r"\!", " ! "),
                (r"\?", " ? "), (r"\;", " "), (r"\:", " "), (r"\s+", " ")]
    line = line.lower()
    for p, r in patterns:
        line = re.sub(p, r, line)
    return line.split()


# TODO(synk): the sequential-regex edge case where a deleted '"' sits inside a
# would-be "<br />" match is not reproduced (the kernel classifies fixed
# positions; torchtext rewrites the string between regexes).

if __name__ == "__main__":
    # deterministic batch of 8 lines built from PRNGKey(0): 7 random + 1 fixed
    key = jax.random.PRNGKey(0)
    pool = "abcDEFghijKLMnopQRStuvWXyz0123456789 .,!?;:'\""
    idx = np.asarray(jax.random.randint(key, (7, 100), 0, len(pool)))
    lines = ["".join(pool[int(i)] for i in row) for row in idx]
    lines.append("You CAN now, install TorchText <br /> using \"pip\" -- "
                 "isn't that great?!")

    toks = basic_english_normalize_batch_pallas(lines)
    for line, got in zip(lines, toks):
        ref = _ref_basic_english_normalize(line)
        assert got == ref, (line, got, ref)

    # single-line forward() path also works (reuses the cached 1-block kernel)
    assert (basic_english_normalize_pallas(lines[-1])
            == _ref_basic_english_normalize(lines[-1]))

    print("KERNEL_OK")
</pallas_src>

<mosaic_0001>
module attributes {stable_mosaic.version = 11 : i64} {
  func.func @_normalize_kernel(%arg0: i32, %arg1: memref<8x128xi32, #tpu.memory_space<vmem>>, %arg2: memref<8x128xi32, #tpu.memory_space<vmem>>) attributes {dimension_semantics = [#tpu.dimension_semantics<parallel>], iteration_bounds = array<i64: 1>, scalar_prefetch = 0 : i64, scratch_operands = 0 : i64, tpu.core_type = #tpu.core_type<tc>, window_params = [{transform_indices = @transform_0, window_bounds = array<i64: 8, 128>}, {transform_indices = @transform_1, window_bounds = array<i64: 8, 128>}]} {
    %c0 = arith.constant 0 : index
    %c0_0 = arith.constant 0 : index
    %0 = vector.load %arg1[%c0, %c0_0] : memref<8x128xi32, #tpu.memory_space<vmem>>, vector<8x128xi32>
    %c65_i32 = arith.constant 65 : i32
    %1 = vector.broadcast %c65_i32 : i32 to vector<8x128xi32>
    %2 = arith.cmpi sge, %0, %1 : vector<8x128xi32>
    %c90_i32 = arith.constant 90 : i32
    %3 = vector.broadcast %c90_i32 : i32 to vector<8x128xi32>
    %4 = arith.cmpi sle, %0, %3 : vector<8x128xi32>
    %5 = arith.andi %2, %4 : vector<8x128xi1>
    %6 = arith.extui %5 : vector<8x128xi1> to vector<8x128xi32>
    %c32_i32 = arith.constant 32 : i32
    %7 = vector.broadcast %c32_i32 : i32 to vector<8x128xi32>
    %8 = arith.muli %6, %7 : vector<8x128xi32>
    %9 = arith.addi %0, %8 : vector<8x128xi32>
    %c60_i32 = arith.constant 60 : i32
    %10 = vector.broadcast %c60_i32 : i32 to vector<8x128xi32>
    %11 = arith.cmpi eq, %9, %10 : vector<8x128xi32>
    %12 = arith.extui %11 : vector<8x128xi1> to vector<8x128xi32>
    %c127_i32 = arith.constant 127 : i32
    %13 = tpu.dynamic_rotate %9 by %c127_i32 dim 1 : vector<8x128xi32>, i32 -> vector<8x128xi32>
    %c98_i32 = arith.constant 98 : i32
    %14 = vector.broadcast %c98_i32 : i32 to vector<8x128xi32>
    %15 = arith.cmpi eq, %13, %14 : vector<8x128xi32>
    %16 = arith.extui %15 : vector<8x128xi1> to vector<8x128xi32>
    %17 = arith.addi %12, %16 : vector<8x128xi32>
    %c126_i32 = arith.constant 126 : i32
    %18 = tpu.dynamic_rotate %9 by %c126_i32 dim 1 : vector<8x128xi32>, i32 -> vector<8x128xi32>
    %c114_i32 = arith.constant 114 : i32
    %19 = vector.broadcast %c114_i32 : i32 to vector<8x128xi32>
    %20 = arith.cmpi eq, %18, %19 : vector<8x128xi32>
    %21 = arith.extui %20 : vector<8x128xi1> to vector<8x128xi32>
    %22 = arith.addi %17, %21 : vector<8x128xi32>
    %c125_i32 = arith.constant 125 : i32
    %23 = tpu.dynamic_rotate %9 by %c125_i32 dim 1 : vector<8x128xi32>, i32 -> vector<8x128xi32>
    %c32_i32_1 = arith.constant 32 : i32
    %24 = vector.broadcast %c32_i32_1 : i32 to vector<8x128xi32>
    %25 = arith.cmpi eq, %23, %24 : vector<8x128xi32>
    %26 = arith.extui %25 : vector<8x128xi1> to vector<8x128xi32>
    %27 = arith.addi %22, %26 : vector<8x128xi32>
    %c124_i32 = arith.constant 124 : i32
    %28 = tpu.dynamic_rotate %9 by %c124_i32 dim 1 : vector<8x128xi32>, i32 -> vector<8x128xi32>
    %c47_i32 = arith.constant 47 : i32
    %29 = vector.broadcast %c47_i32 : i32 to vector<8x128xi32>
    %30 = arith.cmpi eq, %28, %29 : vector<8x128xi32>
    %31 = arith.extui %30 : vector<8x128xi1> to vector<8x128xi32>
    %32 = arith.addi %27, %31 : vector<8x128xi32>
    %c123_i32 = arith.constant 123 : i32
    %33 = tpu.dynamic_rotate %9 by %c123_i32 dim 1 : vector<8x128xi32>, i32 -> vector<8x128xi32>
    %c62_i32 = arith.constant 62 : i32
    %34 = vector.broadcast %c62_i32 : i32 to vector<8x128xi32>
    %35 = arith.cmpi eq, %33, %34 : vector<8x128xi32>
    %36 = arith.extui %35 : vector<8x128xi1> to vector<8x128xi32>
    %37 = arith.addi %32, %36 : vector<8x128xi32>
    %38 = tpu.iota {dimensions = array<i32: 1>} : vector<8x128xi32>
    %c6_i32 = arith.constant 6 : i32
    %39 = vector.broadcast %c6_i32 : i32 to vector<8x128xi32>
    %40 = arith.cmpi eq, %37, %39 : vector<8x128xi32>
    %c122_i32 = arith.constant 122 : i32
    %41 = vector.broadcast %c122_i32 : i32 to vector<8x128xi32>
    %42 = arith.cmpi sle, %38, %41 : vector<8x128xi32>
    %43 = arith.andi %40, %42 : vector<8x128xi1>
    %44 = arith.extui %43 : vector<8x128xi1> to vector<8x128xi32>
    %c1_i32 = arith.constant 1 : i32
    %45 = tpu.dynamic_rotate %44 by %c1_i32 dim 1 : vector<8x128xi32>, i32 -> vector<8x128xi32>
    %46 = arith.addi %44, %45 : vector<8x128xi32>
    %c2_i32 = arith.constant 2 : i32
    %47 = tpu.dynamic_rotate %44 by %c2_i32 dim 1 : vector<8x128xi32>, i32 -> vector<8x128xi32>
    %48 = arith.addi %46, %47 : vector<8x128xi32>
    %c3_i32 = arith.constant 3 : i32
    %49 = tpu.dynamic_rotate %44 by %c3_i32 dim 1 : vector<8x128xi32>, i32 -> vector<8x128xi32>
    %50 = arith.addi %48, %49 : vector<8x128xi32>
    %c4_i32 = arith.constant 4 : i32
    %51 = tpu.dynamic_rotate %44 by %c4_i32 dim 1 : vector<8x128xi32>, i32 -> vector<8x128xi32>
    %52 = arith.addi %50, %51 : vector<8x128xi32>
    %c5_i32 = arith.constant 5 : i32
    %53 = tpu.dynamic_rotate %44 by %c5_i32 dim 1 : vector<8x128xi32>, i32 -> vector<8x128xi32>
    %54 = arith.addi %52, %53 : vector<8x128xi32>
    %c0_i32 = arith.constant 0 : i32
    %55 = vector.broadcast %c0_i32 : i32 to vector<8x128xi32>
    %56 = arith.cmpi sgt, %54, %55 : vector<8x128xi32>
    %c9_i32 = arith.constant 9 : i32
    %57 = vector.broadcast %c9_i32 : i32 to vector<8x128xi32>
    %58 = arith.cmpi sge, %9, %57 : vector<8x128xi32>
    %c13_i32 = arith.constant 13 : i32
    %59 = vector.broadcast %c13_i32 : i32 to vector<8x128xi32>
    %60 = arith.cmpi sle, %9, %59 : vector<8x128xi32>
    %61 = arith.andi %58, %60 : vector<8x128xi1>
    %c32_i32_2 = arith.constant 32 : i32
    %62 = vector.broadcast %c32_i32_2 : i32 to vector<8x128xi32>
    %63 = arith.cmpi eq, %9, %62 : vector<8x128xi32>
    %64 = arith.ori %61, %63 : vector<8x128xi1>
    %c59_i32 = arith.constant 59 : i32
    %65 = vector.broadcast %c59_i32 : i32 to vector<8x128xi32>
    %66 = arith.cmpi eq, %9, %65 : vector<8x128xi32>
    %67 = arith.ori %64, %66 : vector<8x128xi1>
    %c58_i32 = arith.constant 58 : i32
    %68 = vector.broadcast %c58_i32 : i32 to vector<8x128xi32>
    %69 = arith.cmpi eq, %9, %68 : vector<8x128xi32>
    %70 = arith.ori %67, %69 : vector<8x128xi1>
    %71 = arith.ori %70, %56 : vector<8x128xi1>
    %c34_i32 = arith.constant 34 : i32
    %72 = vector.broadcast %c34_i32 : i32 to vector<8x128xi32>
    %73 = arith.cmpi eq, %9, %72 : vector<8x128xi32>
    %c39_i32 = arith.constant 39 : i32
    %74 = vector.broadcast %c39_i32 : i32 to vector<8x128xi32>
    %75 = arith.cmpi eq, %9, %74 : vector<8x128xi32>
    %c46_i32 = arith.constant 46 : i32
    %76 = vector.broadcast %c46_i32 : i32 to vector<8x128xi32>
    %77 = arith.cmpi eq, %9, %76 : vector<8x128xi32>
    %78 = arith.ori %75, %77 : vector<8x128xi1>
    %c44_i32 = arith.constant 44 : i32
    %79 = vector.broadcast %c44_i32 : i32 to vector<8x128xi32>
    %80 = arith.cmpi eq, %9, %79 : vector<8x128xi32>
    %81 = arith.ori %78, %80 : vector<8x128xi1>
    %c40_i32 = arith.constant 40 : i32
    %82 = vector.broadcast %c40_i32 : i32 to vector<8x128xi32>
    %83 = arith.cmpi eq, %9, %82 : vector<8x128xi32>
    %84 = arith.ori %81, %83 : vector<8x128xi1>
    %c41_i32 = arith.constant 41 : i32
    %85 = vector.broadcast %c41_i32 : i32 to vector<8x128xi32>
    %86 = arith.cmpi eq, %9, %85 : vector<8x128xi32>
    %87 = arith.ori %84, %86 : vector<8x128xi1>
    %c33_i32 = arith.constant 33 : i32
    %88 = vector.broadcast %c33_i32 : i32 to vector<8x128xi32>
    %89 = arith.cmpi eq, %9, %88 : vector<8x128xi32>
    %90 = arith.ori %87, %89 : vector<8x128xi1>
    %c63_i32 = arith.constant 63 : i32
    %91 = vector.broadcast %c63_i32 : i32 to vector<8x128xi32>
    %92 = arith.cmpi eq, %9, %91 : vector<8x128xi32>
    %93 = arith.ori %90, %92 : vector<8x128xi1>
    %94 = arith.extui %71 : vector<8x128xi1> to vector<8x128xi32>
    %c1_i32_3 = arith.constant 1 : i32
    %95 = vector.broadcast %c1_i32_3 : i32 to vector<8x128xi32>
    %96 = arith.muli %94, %95 : vector<8x128xi32>
    %97 = arith.extui %73 : vector<8x128xi1> to vector<8x128xi32>
    %c3_i32_4 = arith.constant 3 : i32
    %98 = vector.broadcast %c3_i32_4 : i32 to vector<8x128xi32>
    %99 = arith.muli %97, %98 : vector<8x128xi32>
    %100 = arith.addi %96, %99 : vector<8x128xi32>
    %101 = arith.extui %93 : vector<8x128xi1> to vector<8x128xi32>
    %c2_i32_5 = arith.constant 2 : i32
    %102 = vector.broadcast %c2_i32_5 : i32 to vector<8x128xi32>
    %103 = arith.muli %101, %102 : vector<8x128xi32>
    %104 = arith.addi %100, %103 : vector<8x128xi32>
    %c8_i32 = arith.constant 8 : i32
    %105 = vector.broadcast %c8_i32 : i32 to vector<8x128xi32>
    %106 = arith.shli %104, %105 : vector<8x128xi32>
    %107 = arith.ori %9, %106 : vector<8x128xi32>
    %c0_6 = arith.constant 0 : index
    %c0_7 = arith.constant 0 : index
    %108 = vector.load %arg2[%c0_6, %c0_7] : memref<8x128xi32, #tpu.memory_space<vmem>>, vector<8x128xi32>
    tpu.vector_store %arg2[%c0_6, %c0_7], %107 {strides = array<i32>} : memref<8x128xi32, #tpu.memory_space<vmem>>, vector<8x128xi32>,
    return
  }
  func.func @transform_0(%arg0: i32) -> (i32, i32) {
    %c0_i32 = arith.constant 0 : i32
    %c0_i32_0 = arith.constant 0 : i32
    return %arg0, %c0_i32 : i32, i32
  }
  func.func @transform_1(%arg0: i32) -> (i32, i32) {
    %c0_i32 = arith.constant 0 : i32
    %c0_i32_0 = arith.constant 0 : i32
    return %arg0, %c0_i32 : i32, i32
  }
}

</mosaic_0001>

<llo_original>
// kernel: tpu_custom_call.1
$region0: #{tpu_custom_call.1}
  #allocation0 [shape = 'u32[]', space=smem, size = 0x4, offset = 0x4, fixed_abs, tag = 'smem constant byte address 0x4 - core index']
  #allocation1 [shape = 'u32[144,128]{1,0:T(1,128)}', space=vmem, size = 0x12000, scoped, tag = 'internal scratch']
  %s0 = inlined_call_operand.hbm [shape: s32[8,128], index: 0, kind: input, shape index: {}]
  %s1 = inlined_call_operand.hbm [shape: s32[8,128], index: 1, kind: output, shape index: {}]
  %s2 = sld [smem:[#allocation0]]
  $region18: #{tpu_custom_call.1} parent=0
    _
  %s4 = ssub.s32 1, %s2
  %s5 = scalar_select 0, %s4, %s2
  $region1: #{tpu_custom_call.1} parent=0
    #allocation2 [shape = 'u8[4096]{0}', space=vmem, size = 0x1000, scoped, tag = 'input window, operand 0, single buffered']
    #allocation3 [shape = 's32[1]{0}', space=sflag, size = 0x4, scoped, tag = 'scoped memory for tpu_custom_call.1']
    #allocation4 [shape = 's32[1]{0}', space=sflag, size = 0x4, scoped, tag = 'scoped memory for tpu_custom_call.1']
    #allocation5 [shape = 'u8[4096]{0}', space=vmem, size = 0x1000, scoped, tag = 'output window, operand 0, single buffered']
    %6 = vsyncpa [#allocation3], 0
    %7 = vsyncpa [#allocation4], 0
    // Predicated region
    $region2: #{tpu_custom_call.1} parent=1 // pred_check
      _
    $region3: #{tpu_custom_call.1} parent=1 // pred_check_branch
      %9 = sbr.rel (0) target = $region5
    $region4: #{tpu_custom_call.1} parent=1 // pred_region
      %s11 = ssub.s32 128, 128
      %12 = vsyncadd [#allocation3], %s11
      %s14 = sshll.u32 [#allocation2], 4
      %s15 = int_to_ptr.vmem [resolvable:$true] %s14
      %17 = dma.hbm_to_vmem [thread:$0]  %s0, 128, %s15, [#allocation3]
    $region5: #{tpu_custom_call.1} parent=1 // pred_fallthru
      _
    // Predicated region
    $region6: #{tpu_custom_call.1} parent=1 // pred_check
      _
    $region7: #{tpu_custom_call.1} parent=1 // pred_check_branch
      %19 = sbr.rel (0) target = $region9
    $region8: #{tpu_custom_call.1} parent=1 // pred_region
      %20 = dma.done [#allocation3], 128
    $region9: #{tpu_custom_call.1} parent=1 // pred_fallthru
      _
    %v21 = vld [vmem:[#allocation2] sm:$0xff]
    %vm22 = vcmp.ge.s32.totalorder %v21, 65
    %vm23 = vcmp.le.s32.totalorder %v21, 90
    %vm24 = vmand %vm22, %vm23
    %v25 = vsel %vm24, 1, 0
    %v26 = vmul.u32 %v25, 32
    %v27 = vadd.s32 %v21, %v26
    %vm28 = vcmp.eq.s32.totalorder %v27, 60
    %v29 = vsel %vm28, 1, 0
    %30 = vrot.lane.b32.xlu0 %v27, 127
    %v31 = vpop.permute.xlu0 %30
    %vm32 = vcmp.eq.s32.totalorder %v31, 98
    %v33 = vsel %vm32, 1, 0
    %v34 = vadd.s32 %v29, %v33
    %35 = vrot.lane.b32.xlu0 %v27, 126
    %v36 = vpop.permute.xlu0 %35
    %vm37 = vcmp.eq.s32.totalorder %v36, 114
    %v38 = vsel %vm37, 1, 0
    %v39 = vadd.s32 %v34, %v38
    %40 = vrot.lane.b32.xlu0 %v27, 125
    %v41 = vpop.permute.xlu0 %40
    %vm42 = vcmp.eq.s32.totalorder %v41, 32
    %v43 = vsel %vm42, 1, 0
    %v44 = vadd.s32 %v39, %v43
    %45 = vrot.lane.b32.xlu0 %v27, 124
    %v46 = vpop.permute.xlu0 %45
    %vm47 = vcmp.eq.s32.totalorder %v46, 47
    %v48 = vsel %vm47, 1, 0
    %v49 = vadd.s32 %v44, %v48
    %50 = vrot.lane.b32.xlu0 %v27, 123
    %v51 = vpop.permute.xlu0 %50
    %vm52 = vcmp.eq.s32.totalorder %v51, 62
    %v53 = vsel %vm52, 1, 0
    %v54 = vadd.s32 %v49, %v53
    %v55 = vlaneseq
    %v56 = vand.u32 %v55, 127
    %vm57 = vcmp.eq.s32.totalorder %v54, 6
    %vm58 = vcmp.le.s32.totalorder %v56, 122
    %vm59 = vmand %vm57, %vm58
    %v60 = vsel %vm59, 1, 0
    %61 = vrot.lane.b32.xlu0 %v60, 1
    %v62 = vpop.permute.xlu0 %61
    %v63 = vadd.s32 %v60, %v62
    %64 = vrot.lane.b32.xlu0 %v60, 2
    %v65 = vpop.permute.xlu0 %64
    %v66 = vadd.s32 %v63, %v65
    %67 = vrot.lane.b32.xlu0 %v60, 3
    %v68 = vpop.permute.xlu0 %67
    %v69 = vadd.s32 %v66, %v68
    %70 = vrot.lane.b32.xlu0 %v60, 4
    %v71 = vpop.permute.xlu0 %70
    %v72 = vadd.s32 %v69, %v71
    %73 = vrot.lane.b32.xlu0 %v60, 5
    %v74 = vpop.permute.xlu0 %73
    %v75 = vadd.s32 %v72, %v74
    %vm76 = vcmp.gt.s32.totalorder %v75, 0
    %vm77 = vcmp.ge.s32.totalorder %v27, 9
    %vm78 = vcmp.le.s32.totalorder %v27, 13
    %vm79 = vmand %vm77, %vm78
    %vm80 = vcmp.eq.s32.totalorder %v27, 32
    %vm81 = vmor %vm79, %vm80
    %vm82 = vcmp.eq.s32.totalorder %v27, 59
    %vm83 = vmor %vm81, %vm82
    %vm84 = vcmp.eq.s32.totalorder %v27, 58
    %vm85 = vmor %vm83, %vm84
    %vm86 = vmor %vm85, %vm76
    %vm87 = vcmp.eq.s32.totalorder %v27, 34
    %vm88 = vcmp.eq.s32.totalorder %v27, 39
    %vm89 = vcmp.eq.s32.totalorder %v27, 46
    %vm90 = vmor %vm88, %vm89
    %vm91 = vcmp.eq.s32.totalorder %v27, 44
    %vm92 = vmor %vm90, %vm91
    %vm93 = vcmp.eq.s32.totalorder %v27, 40
    %vm94 = vmor %vm92, %vm93
    %vm95 = vcmp.eq.s32.totalorder %v27, 41
    %vm96 = vmor %vm94, %vm95
    %vm97 = vcmp.eq.s32.totalorder %v27, 33
    %vm98 = vmor %vm96, %vm97
    %vm99 = vcmp.eq.s32.totalorder %v27, 63
    %vm100 = vmor %vm98, %vm99
    %v101 = vsel %vm86, 1, 0
    %v102 = vsel %vm87, 1, 0
    %v103 = vmul.u32 %v102, 3
    %v104 = vadd.s32 %v101, %v103
    %v105 = vsel %vm100, 1, 0
    %v106 = vmul.u32 %v105, 2
    %v107 = vadd.s32 %v104, %v106
    %v108 = vshll.u32 %v107, 8
    %v109 = vor.u32 %v27, %v108
    %110 = vst [vmem:[#allocation5] sm:$0xff] %v109
    // Predicated region
    $region10: #{tpu_custom_call.1} parent=1 // pred_check
      _
    $region11: #{tpu_custom_call.1} parent=1 // pred_check_branch
      %112 = sbr.rel (0) target = $region13
    $region12: #{tpu_custom_call.1} parent=1 // pred_region
      %s114 = ssub.s32 128, 128
      %115 = vsyncadd [#allocation4], %s114
      %s117 = sshll.u32 [#allocation5], 4
      %s118 = int_to_ptr.vmem [resolvable:$true] %s117
      %120 = dma.vmem_to_hbm [thread:$0]  %s118, 128, %s1, [#allocation4]
    $region13: #{tpu_custom_call.1} parent=1 // pred_fallthru
      _
    // Predicated region
    $region14: #{tpu_custom_call.1} parent=1 // pred_check
      _
    $region15: #{tpu_custom_call.1} parent=1 // pred_check_branch
      %122 = sbr.rel (0) target = $region17
    $region16: #{tpu_custom_call.1} parent=1 // pred_region
      %123 = dma.done [#allocation4], 128
    $region17: #{tpu_custom_call.1} parent=1 // pred_fallthru
      _
    %124 = vsyncpa [#allocation3], 1
    %125 = vsyncpa [#allocation4], 1

</llo_original>
